<compile_context>
chip_gen: v7x
topology: tpu7x:2x2x1
jax: 0.10.0
libtpu: 0.0.40
codegen_flags: <defaults>
</compile_context>

<pallas_src>
import functools

import jax
import jax.numpy as jnp
from jax import lax
from jax.experimental import pallas as pl
from jax.experimental.pallas import tpu as pltpu


def _vmem_budget():
    """(per-x-block byte target, scoped vmem_limit_bytes), generation-aware."""
    phys = None
    try:
        phys = getattr(pltpu.get_tpu_info(), "vmem_capacity_bytes", None)
    except Exception:
        phys = None
    if phys is not None and phys >= (128 << 20):   # v5e / v6e: 128 MiB physical VMEM
        return 8 << 20, 48 << 20
    return 4 << 20, 32 << 20                       # v7x (64 MiB physical) / unknown


def _choose_blocks(b, s, h, itemsize, target_block_bytes):
    """Byte-based block sizing (no hard row cap), per perf review.

    Constraints honored: x block last two dims (TS, H): TS % 8 == 0 or TS == S,
    H is always the full dim; mask block (TB, TS): TB % 8 == 0 or TB == B,
    TS % 128 == 0 or TS == S.
    """
    full_seq_row_bytes = s * h * itemsize
    tb = target_block_bytes // max(1, full_seq_row_bytes)
    if tb >= b:
        return b, s                           # whole array in one block
    if tb >= 8:
        return int((tb // 8) * 8), s          # tile batch only, full sequence
    # Very long sequences: tile the sequence axis too.
    tb = b if b < 8 else 8
    ts = target_block_bytes // max(1, tb * h * itemsize)
    ts = max(128, (ts // 128) * 128)
    if ts >= s:
        return tb, s
    return tb, int(ts)


def _mean_pool_kernel(x_ref, m_ref, o_ref, acc_ref, msum_ref, *,
                      seq_len, block_seq):
    s = pl.program_id(1)

    @pl.when(s == 0)
    def _():
        acc_ref[...] = jnp.zeros_like(acc_ref)
        msum_ref[...] = jnp.zeros_like(msum_ref)

    xf = x_ref[...].astype(jnp.float32)      # (TB, TS, H) upcast in-VMEM
    mf = m_ref[...].astype(jnp.float32)      # (TB, TS)  (int or float mask ok)

    if seq_len % block_seq != 0:
        # Ragged last seq block: zero padded positions NaN-safely (padded DMA
        # data is undefined; jnp.where discards anything it produces).
        seq_idx = s * block_seq + lax.broadcasted_iota(jnp.int32, mf.shape, 1)
        valid = seq_idx < seq_len
        mf = jnp.where(valid, mf, 0.0)
        prod = jnp.where(valid[:, :, None], xf * mf[:, :, None], 0.0)
    else:
        prod = xf * mf[:, :, None]

    acc_ref[...] += jnp.sum(prod, axis=1)                    # (TB, H)
    msum_ref[...] += jnp.sum(mf, axis=1, keepdims=True)      # (TB, 1)

    @pl.when(s == pl.num_programs(1) - 1)
    def _():
        denom = jnp.maximum(msum_ref[...], jnp.float32(1e-9))   # clamp(min=1e-9)
        o_ref[...] = (acc_ref[...] / denom).astype(o_ref.dtype)


def mean_pooling(x, attention_mask, *, block_batch=None, block_seq=None):
    """x: (B, S, H) hidden states (f32/bf16); attention_mask: (B, S) int/float."""
    b, s, h = x.shape
    assert attention_mask.shape == (b, s)

    target_bytes, vmem_limit = _vmem_budget()
    itemsize = jnp.dtype(x.dtype).itemsize
    tb, ts = _choose_blocks(b, s, h, itemsize, target_bytes)
    if block_batch is not None:
        tb = int(block_batch)
    if block_seq is not None:
        ts = int(block_seq)

    kernel = functools.partial(_mean_pool_kernel, seq_len=s, block_seq=ts)
    return pl.pallas_call(
        kernel,
        out_shape=jax.ShapeDtypeStruct((b, h), jnp.float32),
        grid_spec=pltpu.PrefetchScalarGridSpec(
            num_scalar_prefetch=0,
            grid=(pl.cdiv(b, tb), pl.cdiv(s, ts)),
            in_specs=[
                pl.BlockSpec((tb, ts, h), lambda bi, si: (bi, si, 0)),
                pl.BlockSpec((tb, ts), lambda bi, si: (bi, si)),
            ],
            out_specs=pl.BlockSpec((tb, h), lambda bi, si: (bi, 0)),
            scratch_shapes=[pltpu.VMEM((tb, h), jnp.float32),
                            pltpu.VMEM((tb, 1), jnp.float32)],
        ),
        compiler_params=pltpu.CompilerParams(
            dimension_semantics=("parallel", "arbitrary"),
            vmem_limit_bytes=vmem_limit),
    )(x, attention_mask)


def _mean_pool_ref(x, mask):
    m = mask.astype(jnp.float32)[:, :, None]
    se = jnp.sum(x.astype(jnp.float32) * m, axis=1)
    sm = jnp.clip(jnp.sum(m, axis=1), 1e-9, None)
    return se / sm


if __name__ == "__main__":
    key = jax.random.PRNGKey(0)
    k1, k2, k3 = jax.random.split(key, 3)

    # Shapes implied by Net2.feature: last_hidden_state (B, S, H), mask (B, S).
    B, S, H = 2, 8, 32
    x = jax.random.normal(k1, (B, S, H), dtype=jnp.float32)
    lens = jnp.array([8, 5], dtype=jnp.int32)
    mask = (jnp.arange(S)[None, :] < lens[:, None]).astype(jnp.int32)

    out = mean_pooling(x, mask)
    jax.block_until_ready(out)
    ref = _mean_pool_ref(x, mask)
    assert jnp.allclose(out, ref, atol=1e-5, rtol=1e-5), (out, ref)

    # bf16 hidden states: DMA'd as bf16, upcast in-VMEM (no wrapper-side astype).
    x_bf16 = x.astype(jnp.bfloat16)
    out_bf16 = mean_pooling(x_bf16, mask)
    jax.block_until_ready(out_bf16)
    ref_bf16 = _mean_pool_ref(x_bf16, mask)
    assert jnp.allclose(out_bf16, ref_bf16, atol=1e-4, rtol=1e-4), (out_bf16, ref_bf16)

    # Multi-block grid: ragged batch (10 vs TB=8), ragged seq (200 vs TS=128),
    # plus an all-padding row to exercise the 1e-9 clamp.
    B2, S2, H2 = 10, 200, 128
    x2 = jax.random.normal(k2, (B2, S2, H2), dtype=jnp.float32)
    lens2 = jax.random.randint(k3, (B2,), 0, S2 + 1).at[0].set(0)
    mask2 = (jnp.arange(S2)[None, :] < lens2[:, None]).astype(jnp.float32)
    out2 = mean_pooling(x2, mask2, block_batch=8, block_seq=128)
    jax.block_until_ready(out2)
    ref2 = _mean_pool_ref(x2, mask2)
    assert jnp.allclose(out2, ref2, atol=1e-4, rtol=1e-4), \
        float(jnp.max(jnp.abs(out2 - ref2)))

    print("KERNEL_OK")
</pallas_src>

<mosaic_0001>
module attributes {stable_mosaic.version = 11 : i64} {
  func.func @_mean_pool_kernel(%arg0: i32, %arg1: i32, %arg2: memref<2x8x32xf32, #tpu.memory_space<vmem>>, %arg3: memref<2x8xi32, #tpu.memory_space<vmem>>, %arg4: memref<2x32xf32, #tpu.memory_space<vmem>>, %arg5: memref<2x32xf32, #tpu.memory_space<vmem>>, %arg6: memref<2x1xf32, #tpu.memory_space<vmem>>) attributes {dimension_semantics = [#tpu.dimension_semantics<parallel>, #tpu.dimension_semantics<arbitrary>], iteration_bounds = array<i64: 1, 1>, scalar_prefetch = 0 : i64, scratch_operands = 2 : i64, tpu.core_type = #tpu.core_type<tc>, window_params = [{transform_indices = @transform_0, window_bounds = array<i64: 2, 8, 32>}, {transform_indices = @transform_1, window_bounds = array<i64: 2, 8>}, {transform_indices = @transform_2, window_bounds = array<i64: 2, 32>}]} {
    %c0_i32 = arith.constant 0 : i32
    %0 = arith.cmpi eq, %arg1, %c0_i32 : i32
    %1 = arith.extui %0 : i1 to i32
    %c0_i32_0 = arith.constant 0 : i32
    %2 = arith.cmpi ne, %1, %c0_i32_0 : i32
    scf.if %2 {
      %cst_16 = arith.constant 0.000000e+00 : f32
      %21 = vector.broadcast %cst_16 : f32 to vector<2x32xf32>
      %c0_17 = arith.constant 0 : index
      %c0_18 = arith.constant 0 : index
      %22 = vector.load %arg5[%c0_17, %c0_18] : memref<2x32xf32, #tpu.memory_space<vmem>>, vector<2x32xf32>
      tpu.vector_store %arg5[%c0_17, %c0_18], %21 {strides = array<i32>} : memref<2x32xf32, #tpu.memory_space<vmem>>, vector<2x32xf32>,
      %cst_19 = arith.constant 0.000000e+00 : f32
      %23 = vector.broadcast %cst_19 : f32 to vector<2x1xf32>
      %c0_20 = arith.constant 0 : index
      %c0_21 = arith.constant 0 : index
      %24 = vector.load %arg6[%c0_20, %c0_21] : memref<2x1xf32, #tpu.memory_space<vmem>>, vector<2x1xf32>
      tpu.vector_store %arg6[%c0_20, %c0_21], %23 {strides = array<i32>} : memref<2x1xf32, #tpu.memory_space<vmem>>, vector<2x1xf32>,
    } else {
    }
    %c0 = arith.constant 0 : index
    %c0_1 = arith.constant 0 : index
    %c0_2 = arith.constant 0 : index
    %3 = vector.load %arg2[%c0, %c0_1, %c0_2] : memref<2x8x32xf32, #tpu.memory_space<vmem>>, vector<2x8x32xf32>
    %c0_3 = arith.constant 0 : index
    %c0_4 = arith.constant 0 : index
    %4 = vector.load %arg3[%c0_3, %c0_4] : memref<2x8xi32, #tpu.memory_space<vmem>>, vector<2x8xi32>
    %5 = arith.sitofp %4 : vector<2x8xi32> to vector<2x8xf32>
    %6 = vector.shape_cast %5 : vector<2x8xf32> to vector<2x8x1xf32>
    %7 = vector.broadcast %6 : vector<2x8x1xf32> to vector<2x8x32xf32>
    %8 = arith.mulf %3, %7 : vector<2x8x32xf32>
    %c0_5 = arith.constant 0 : index
    %c0_6 = arith.constant 0 : index
    %9 = vector.load %arg5[%c0_5, %c0_6] : memref<2x32xf32, #tpu.memory_space<vmem>>, vector<2x32xf32>
    %cst = arith.constant dense<0.000000e+00> : vector<2x32xf32>
    %10 = vector.multi_reduction <add>, %8, %cst [1] : vector<2x8x32xf32> to vector<2x32xf32>
    %11 = arith.addf %9, %10 : vector<2x32xf32>
    %c0_7 = arith.constant 0 : index
    %c0_8 = arith.constant 0 : index
    %12 = vector.load %arg5[%c0_7, %c0_8] : memref<2x32xf32, #tpu.memory_space<vmem>>, vector<2x32xf32>
    tpu.vector_store %arg5[%c0_7, %c0_8], %11 {strides = array<i32>} : memref<2x32xf32, #tpu.memory_space<vmem>>, vector<2x32xf32>,
    %c0_9 = arith.constant 0 : index
    %c0_10 = arith.constant 0 : index
    %13 = vector.load %arg6[%c0_9, %c0_10] : memref<2x1xf32, #tpu.memory_space<vmem>>, vector<2x1xf32>
    %cst_11 = arith.constant dense<0.000000e+00> : vector<2xf32>
    %14 = vector.multi_reduction <add>, %5, %cst_11 [1] : vector<2x8xf32> to vector<2xf32>
    %15 = vector.shape_cast %14 : vector<2xf32> to vector<2x1xf32>
    %16 = arith.addf %13, %15 : vector<2x1xf32>
    %c0_12 = arith.constant 0 : index
    %c0_13 = arith.constant 0 : index
    %17 = vector.load %arg6[%c0_12, %c0_13] : memref<2x1xf32, #tpu.memory_space<vmem>>, vector<2x1xf32>
    tpu.vector_store %arg6[%c0_12, %c0_13], %16 {strides = array<i32>} : memref<2x1xf32, #tpu.memory_space<vmem>>, vector<2x1xf32>,
    %c0_i32_14 = arith.constant 0 : i32
    %18 = arith.cmpi eq, %arg1, %c0_i32_14 : i32
    %19 = arith.extui %18 : i1 to i32
    %c0_i32_15 = arith.constant 0 : i32
    %20 = arith.cmpi ne, %19, %c0_i32_15 : i32
    scf.if %20 {
      %c0_16 = arith.constant 0 : index
      %c0_17 = arith.constant 0 : index
      %21 = vector.load %arg6[%c0_16, %c0_17] : memref<2x1xf32, #tpu.memory_space<vmem>>, vector<2x1xf32>
      %cst_18 = arith.constant 9.99999971E-10 : f32
      %22 = vector.broadcast %cst_18 : f32 to vector<2x1xf32>
      %23 = arith.maximumf %21, %22 : vector<2x1xf32>
      %c0_19 = arith.constant 0 : index
      %c0_20 = arith.constant 0 : index
      %24 = vector.load %arg5[%c0_19, %c0_20] : memref<2x32xf32, #tpu.memory_space<vmem>>, vector<2x32xf32>
      %25 = vector.broadcast %23 : vector<2x1xf32> to vector<2x32xf32>
      %26 = arith.divf %24, %25 : vector<2x32xf32>
      %c0_21 = arith.constant 0 : index
      %c0_22 = arith.constant 0 : index
      %27 = vector.load %arg4[%c0_21, %c0_22] : memref<2x32xf32, #tpu.memory_space<vmem>>, vector<2x32xf32>
      tpu.vector_store %arg4[%c0_21, %c0_22], %26 {strides = array<i32>} : memref<2x32xf32, #tpu.memory_space<vmem>>, vector<2x32xf32>,
    } else {
    }
    return
  }
  func.func @transform_0(%arg0: i32, %arg1: i32) -> (i32, i32, i32) {
    %c0_i32 = arith.constant 0 : i32
    %c0_i32_0 = arith.constant 0 : i32
    return %arg0, %arg1, %c0_i32 : i32, i32, i32
  }
  func.func @transform_1(%arg0: i32, %arg1: i32) -> (i32, i32) {
    %c0_i32 = arith.constant 0 : i32
    return %arg0, %arg1 : i32, i32
  }
  func.func @transform_2(%arg0: i32, %arg1: i32) -> (i32, i32) {
    %c0_i32 = arith.constant 0 : i32
    %c0_i32_0 = arith.constant 0 : i32
    return %arg0, %c0_i32 : i32, i32
  }
}

</mosaic_0001>

<llo_original>
// kernel: tpu_custom_call.1
$region0: #{tpu_custom_call.1}
  #allocation0 [shape = 'u32[]', space=smem, size = 0x4, offset = 0x4, fixed_abs, tag = 'smem constant byte address 0x4 - core index']
  #allocation1 [shape = 'u32[144,128]{1,0:T(1,128)}', space=vmem, size = 0x12000, scoped, tag = 'internal scratch']
  #allocation2 [shape = 'f32[2,32]{1,0:T(2,128)}', space=vmem, size = 0x400, scoped, tag = 'scratch operand']
  #allocation3 [shape = 'f32[2,1]{1,0:T(2,128)}', space=vmem, size = 0x400, scoped, tag = 'scratch operand']
  %s0 = inlined_call_operand.hbm [shape: f32[2,8,32], index: 0, kind: input, shape index: {}]
  %s1 = inlined_call_operand.vmem [shape: s32[2,8], index: 1, kind: input, shape index: {}]
  %s2 = inlined_call_operand.hbm [shape: f32[2,32], index: 2, kind: output, shape index: {}]
  %s3 = sld [smem:[#allocation0]]
  $region30: #{tpu_custom_call.1} parent=0
    _
  %s5 = ssub.s32 1, %s3
  %s6 = scalar_select 0, %s5, %s3
  $region1: #{tpu_custom_call.1} parent=0
    #allocation4 [shape = 'u8[8192]{0}', space=vmem, size = 0x2000, scoped, tag = 'input window, operand 0, single buffered']
    #allocation5 [shape = 's32[1]{0}', space=sflag, size = 0x4, scoped, tag = 'scoped memory for tpu_custom_call.1']
    #allocation6 [shape = 's32[1]{0}', space=sflag, size = 0x4, scoped, tag = 'scoped memory for tpu_custom_call.1']
    #allocation7 [shape = 'u8[1024]{0}', space=vmem, size = 0x400, scoped, tag = 'output window, operand 0, single buffered']
    %7 = vsyncpa [#allocation5], 0
    %8 = vsyncpa [#allocation6], 0
    // Predicated region
    $region2: #{tpu_custom_call.1} parent=1 // pred_check
      _
    $region3: #{tpu_custom_call.1} parent=1 // pred_check_branch
      %10 = sbr.rel (0) target = $region5
    $region4: #{tpu_custom_call.1} parent=1 // pred_region
      %s12 = ssub.s32 256, 256
      %13 = vsyncadd [#allocation5], %s12
      %s14 = sshll.u32 [#allocation4], 4
      %s15 = int_to_ptr.vmem [resolvable:$true] %s14
      %20 = dma.hbm_to_vmem [thread:$0]  %s0, 256, %s15, [#allocation5], 128, 128, 8
    $region5: #{tpu_custom_call.1} parent=1 // pred_fallthru
      _
    // Predicated region
    $region6: #{tpu_custom_call.1} parent=1 // pred_check
      _
    $region7: #{tpu_custom_call.1} parent=1 // pred_check_branch
      %22 = sbr.rel (0) target = $region9
    $region8: #{tpu_custom_call.1} parent=1 // pred_region
      _
    $region9: #{tpu_custom_call.1} parent=1 // pred_fallthru
      _
    // Predicated region
    $region10: #{tpu_custom_call.1} parent=1 // pred_check
      _
    $region11: #{tpu_custom_call.1} parent=1 // pred_check_branch
      %24 = sbr.rel (0) target = $region13
    $region12: #{tpu_custom_call.1} parent=1 // pred_region
      %25 = dma.done [#allocation5], 256
    $region13: #{tpu_custom_call.1} parent=1 // pred_fallthru
      _
    %p26 = scmp.eq.s32.totalorder 0, 0
    // Predicated region
    $region14: #{tpu_custom_call.1} parent=1 // pred_check
      %p27 = pneg %p26
    $region15: #{tpu_custom_call.1} parent=1 // pred_check_branch
      %29 = sbr.rel (%p27) target = $region17
    $region16: #{tpu_custom_call.1} parent=1 // pred_region
      %vm30 = vcmask 254976
      %31 = vst.msk [vmem:[#allocation2] sm:$0x3] %vm30, 0.0
      %vm32 = vcmask 1024
      %33 = vst.msk [vmem:[#allocation3] sm:$0x3] %vm32, 0.0
    $region17: #{tpu_custom_call.1} parent=1 // pred_fallthru
      _
    %v34 = vld [vmem:[#allocation4] sm:$0xff]
    %v35 = vld [vmem:[#allocation4 + $0x8] sm:$0xff]
    %v36 = vld [vmem:[%s1] sm:$0x3]
    %v37 = vcvt.s32.f32 %v36
    %v38 = vlaneseq
    %v39 = vshrl.u32 %v38, 7
    %v40 = vsub.s32 0, %v39
    %v41 = vrot.slane %v37, %v40
    %43 = vbcast.lane.b32.xlu0 %v41, 256
    %v44 = vpop.permute.xlu0 %43
    %v45 = vlaneseq
    %v46 = vshrl.u32 %v45, 7
    %v47 = vsub.s32 1, %v46
    %v48 = vrot.slane %v37, %v47
    %50 = vbcast.lane.b32.xlu0 %v48, 256
    %v51 = vpop.permute.xlu0 %50
    %v52 = vmul.f32 %v34, %v44
    %v53 = vmul.f32 %v35, %v51
    %v54 = vld [vmem:[#allocation2] sm:$0x3]
    %vm55 = vcmask 261120
    %v56 = vsel %vm55, %v52, 0.0
    %v57 = vrot.slane %v56, 4
    %v58 = vadd.f32 %v56, %v57
    %v59 = vrot.slane %v58, 2
    %v60 = vadd.f32 %v58, %v59
    %v61 = vrot.slane %v60, 1
    %v62 = vadd.f32 %v60, %v61
    %v63 = vsel %vm55, %v53, 0.0
    %v64 = vrot.slane %v63, 4
    %v65 = vadd.f32 %v63, %v64
    %v66 = vrot.slane %v65, 2
    %v67 = vadd.f32 %v65, %v66
    %v68 = vrot.slane %v67, 1
    %v69 = vadd.f32 %v67, %v68
    %vm72 = vcmask 1041409
    %v73 = vsel %vm72, %v69, %v62
    %v75 = vadd.f32 %v54, %v73
    %vm76 = vcmask 254976
    %77 = vst.msk [vmem:[#allocation2] sm:$0x3] %vm76, %v75
    %v78 = vld [vmem:[#allocation3] sm:$0x3]
    %vm79 = vcmask 58368
    %v80 = vsel %vm79, %v37, 0.0
    %81 = vadd.xlane.f32.xlu0 %v80
    %v82 = vpop.xlane.xlu0 %81
    %v83 = vadd.f32 %v78, %v82
    %vm84 = vcmask 1024
    %85 = vst.msk [vmem:[#allocation3] sm:$0x3] %vm84, %v83
    // Predicated region
    $region18: #{tpu_custom_call.1} parent=1 // pred_check
      %p86 = pneg %p26
    $region19: #{tpu_custom_call.1} parent=1 // pred_check_branch
      %88 = sbr.rel (%p86) target = $region21
    $region20: #{tpu_custom_call.1} parent=1 // pred_region
      %v89 = vld [vmem:[#allocation3] sm:$0x3]
      %v90 = vmax.f32 %v89, 1e-09
      %v91 = vld [vmem:[#allocation2] sm:$0x3]
      %93 = vset.pattern.permute.xlu0 0
      %94 = vperm.xlu0 %93, %v90
      %v95 = vpop.permute.xlu0 %94
      %v97 = vrcp.pop %v95
      %v98 = vmul.f32 %v91, %v97
      %99 = vst.msk [vmem:[#allocation7] sm:$0x3] %vm76, %v98
    $region21: #{tpu_custom_call.1} parent=1 // pred_fallthru
      _
    // Predicated region
    $region22: #{tpu_custom_call.1} parent=1 // pred_check
      _
    $region23: #{tpu_custom_call.1} parent=1 // pred_check_branch
      %101 = sbr.rel (0) target = $region25
    $region24: #{tpu_custom_call.1} parent=1 // pred_region
      %s103 = ssub.s32 32, 32
      %104 = vsyncadd [#allocation6], %s103
      %s106 = sshll.u32 [#allocation7], 4
      %s107 = int_to_ptr.vmem [resolvable:$true] %s106
      %109 = dma.vmem_to_hbm [thread:$0]  %s107, 32, %s2, [#allocation6]
    $region25: #{tpu_custom_call.1} parent=1 // pred_fallthru
      _
    // Predicated region
    $region26: #{tpu_custom_call.1} parent=1 // pred_check
      _
    $region27: #{tpu_custom_call.1} parent=1 // pred_check_branch
      %111 = sbr.rel (0) target = $region29
    $region28: #{tpu_custom_call.1} parent=1 // pred_region
      %112 = dma.done [#allocation6], 32
    $region29: #{tpu_custom_call.1} parent=1 // pred_fallthru
      _
    %113 = vsyncpa [#allocation5], 1
    %114 = vsyncpa [#allocation6], 1

</llo_original>
